<compile_context>
chip_gen: v5e
topology: v5e:2x2
jax: 0.10.0
libtpu: 0.0.40
codegen_flags: <defaults>
</compile_context>

<pallas_src>
import jax
import jax.numpy as jnp
from jax import lax
from jax.experimental import pallas as pl
from jax.experimental.pallas import tpu as pltpu


def _indrnn_kernel(x_ref, w_ref, b_ref, whh_ref, h_ref, o_ref):
    # x_ref:   (BN, C_in,  TS)  input spatial tile (channels on sublanes)
    # w_ref:   (C_out, C_in)    1x1 conv weight
    # b_ref:   (C_out, 1)       conv bias (column broadcast)
    # whh_ref: (C_out, 1)       recurrent per-channel weight (column broadcast)
    # h_ref:   (BN, C_out, TS)  hidden-state spatial tile
    # o_ref:   (BN, C_out, TS)  output spatial tile (lane-dense store)
    w = w_ref[...]
    b = b_ref[...]
    whh = whh_ref[...]

    def body(i, carry):
        ih = jnp.dot(w, x_ref[i], preferred_element_type=jnp.float32)
        out = ih + b + whh * h_ref[i].astype(jnp.float32)
        o_ref[i] = jnp.maximum(out, 0.0).astype(o_ref.dtype)
        return carry

    # BN is a static block dimension; short unrolled loop over the images in
    # this block (bn small matmuls per grid step).
    lax.fori_loop(0, x_ref.shape[0], body, 0, unroll=True)


def indrnn_forward(x_nchw, h_nchw, w_conv, b_conv, w_hh, *,
                   tile_s=4096, donate_hidden=False):
    """IndRNN forward (kernel=1, dilation=1 path).

    x_nchw : (N, C_in, H, W)
    h_nchw : (N, C_out, H, W)
    w_conv : (C_out, C_in)    (1x1 conv weight, squeezed)
    b_conv : (C_out,)
    w_hh   : (C_out,)         (weight_hh squeezed)
    returns (N, C_out, H, W)
    """
    N, C_in, H, W = x_nchw.shape
    C_out = w_conv.shape[0]
    S = H * W

    # Free reshapes (no data movement): channels stay contiguous-major,
    # flattened spatial becomes the lane-dense minor axis.
    x = x_nchw.reshape(N, C_in, S)
    h = h_nchw.reshape(N, C_out, S)

    # Lane-aligned spatial tile.  No wrapper-side padding: the grid is
    # cdiv(S, ts) and Pallas pads the reads / masks the writeback of the
    # ragged final block, so out-of-range lanes are never stored.
    target_lanes = max(128, (tile_s // 128) * 128)
    s_lanes = pl.cdiv(S, 128) * 128
    ts = min(target_lanes, s_lanes)
    num_s_tiles = pl.cdiv(S, ts)

    # When one image's spatial extent can't reach the target per-step payload,
    # block the batch dimension too (same total HBM bytes, fewer grid steps).
    bn = 1
    if num_s_tiles == 1 and ts < target_lanes and N > 1:
        bn = min(N, max(1, target_lanes // ts))
        # Keep >= 2 grid steps so the grid still shards across v7x's 2 TCs.
        if bn >= N:
            bn = pl.cdiv(N, 2)
    num_n_tiles = pl.cdiv(N, bn)
    grid = (num_n_tiles, num_s_tiles)

    b_col = b_conv.reshape(C_out, 1)
    whh_col = w_hh.reshape(C_out, 1)

    itemsize = jnp.dtype(x_nchw.dtype).itemsize
    cost = pl.CostEstimate(
        flops=2 * N * S * C_in * C_out,
        transcendentals=0,
        bytes_accessed=N * S * (C_in + 2 * C_out) * itemsize
        + (C_out * C_in + 2 * C_out) * itemsize,
    )

    # Explicit VMEM budget: double-buffered x/h/out tiles + params with
    # headroom; at least 32 MiB (lifts v5e's 16 MiB scoped default), capped at
    # v7x's 64 MiB physical VMEM.
    block_bytes = bn * (C_in + 2 * C_out) * ts * itemsize
    param_bytes = (C_out * C_in + 2 * C_out) * itemsize
    vmem_limit = int(min(64 * 1024 * 1024,
                         max(32 * 1024 * 1024, 3 * (2 * block_bytes + param_bytes))))

    out = pl.pallas_call(
        _indrnn_kernel,
        out_shape=jax.ShapeDtypeStruct((N, C_out, S), x_nchw.dtype),
        grid_spec=pltpu.PrefetchScalarGridSpec(
            num_scalar_prefetch=0,
            grid=grid,
            in_specs=[
                pl.BlockSpec((bn, C_in, ts), lambda n, j: (n, 0, j)),    # x tile
                pl.BlockSpec((C_out, C_in), lambda n, j: (0, 0)),        # conv weight
                pl.BlockSpec((C_out, 1), lambda n, j: (0, 0)),           # conv bias
                pl.BlockSpec((C_out, 1), lambda n, j: (0, 0)),           # weight_hh
                pl.BlockSpec((bn, C_out, ts), lambda n, j: (n, 0, j)),   # hidden tile
            ],
            out_specs=pl.BlockSpec((bn, C_out, ts), lambda n, j: (n, 0, j)),
        ),
        compiler_params=pltpu.CompilerParams(
            dimension_semantics=("parallel", "parallel"),
            vmem_limit_bytes=vmem_limit),
        cost_estimate=cost,
        # h (operand index 4) -> output 0.  Only enable when the caller donates
        # h (e.g. jit donate_argnums); otherwise XLA inserts a defensive copy.
        input_output_aliases=({4: 0} if donate_hidden else {}),
    )(x, w_conv, b_col, whh_col, h)

    return out.reshape(N, C_out, H, W)


def indrnn_reference(x_nchw, h_nchw, w_conv, b_conv, w_hh):
    """Plain-JAX reference matching the PyTorch forward."""
    # 1x1 conv == channelwise matmul
    ih = jnp.einsum("nchw,oc->nohw", x_nchw, w_conv) + b_conv[None, :, None, None]
    out = ih + w_hh[None, :, None, None] * h_nchw
    return jnp.maximum(out, 0.0)


if __name__ == "__main__":
    # Module config (defaults: kernel=1, dilation=1, bias=True)
    input_size = 4
    hidden_size = 32
    kernel = 1

    N, H, W = 2, 16, 16

    key = jax.random.PRNGKey(0)
    k_x, k_h, k_w, k_whh = jax.random.split(key, 4)

    x = jax.random.normal(k_x, (N, input_size, H, W), dtype=jnp.float32)
    hidden = jax.random.normal(k_h, (N, hidden_size, H, W), dtype=jnp.float32)

    # Deterministic parameter init mirroring the PyTorch __init__:
    std = 1.0 / (hidden_size * (1 + kernel ** 2))
    w_conv = std * jax.random.normal(k_w, (hidden_size, input_size), dtype=jnp.float32)
    b_conv = jnp.zeros((hidden_size,), dtype=jnp.float32)        # constant_(bias, 0)
    w_hh = std * jax.random.normal(k_whh, (hidden_size,), dtype=jnp.float32)

    out = indrnn_forward(x, hidden, w_conv, b_conv, w_hh)
    out = jax.block_until_ready(out)

    ref = indrnn_reference(x, hidden, w_conv, b_conv, w_hh)
    assert out.shape == (N, hidden_size, H, W)
    assert jnp.allclose(out, ref, atol=1e-5, rtol=1e-5), "mismatch vs reference"

    print("KERNEL_OK")
</pallas_src>

<mosaic_0001>
module attributes {stable_mosaic.version = 11 : i64} {
  func.func @_indrnn_kernel(%arg0: i32, %arg1: i32, %arg2: memref<1x4x256xf32, #tpu.memory_space<vmem>>, %arg3: memref<32x4xf32, #tpu.memory_space<vmem>>, %arg4: memref<32x1xf32, #tpu.memory_space<vmem>>, %arg5: memref<32x1xf32, #tpu.memory_space<vmem>>, %arg6: memref<1x32x256xf32, #tpu.memory_space<vmem>>, %arg7: memref<1x32x256xf32, #tpu.memory_space<vmem>>) attributes {dimension_semantics = [#tpu.dimension_semantics<parallel>, #tpu.dimension_semantics<parallel>], iteration_bounds = array<i64: 2, 1>, scalar_prefetch = 0 : i64, scratch_operands = 0 : i64, tpu.core_type = #tpu.core_type<tc>, window_params = [{transform_indices = @transform_0, window_bounds = array<i64: 1, 4, 256>}, {pipeline_mode = #tpu.pipeline_mode<synchronous>, transform_indices = @transform_1, window_bounds = array<i64: 32, 4>}, {pipeline_mode = #tpu.pipeline_mode<synchronous>, transform_indices = @transform_2, window_bounds = array<i64: 32, 1>}, {pipeline_mode = #tpu.pipeline_mode<synchronous>, transform_indices = @transform_3, window_bounds = array<i64: 32, 1>}, {transform_indices = @transform_4, window_bounds = array<i64: 1, 32, 256>}, {transform_indices = @transform_5, window_bounds = array<i64: 1, 32, 256>}]} {
    %c0 = arith.constant 0 : index
    %c0_0 = arith.constant 0 : index
    %0 = vector.load %arg3[%c0, %c0_0] : memref<32x4xf32, #tpu.memory_space<vmem>>, vector<32x4xf32>
    %c0_1 = arith.constant 0 : index
    %c0_2 = arith.constant 0 : index
    %1 = vector.load %arg4[%c0_1, %c0_2] : memref<32x1xf32, #tpu.memory_space<vmem>>, vector<32x1xf32>
    %c0_3 = arith.constant 0 : index
    %c0_4 = arith.constant 0 : index
    %2 = vector.load %arg5[%c0_3, %c0_4] : memref<32x1xf32, #tpu.memory_space<vmem>>, vector<32x1xf32>
    %c0_i32 = arith.constant 0 : i32
    %3 = arith.index_cast %c0_i32 : i32 to index
    %c0_5 = arith.constant 0 : index
    %c0_6 = arith.constant 0 : index
    %4 = vector.load %arg2[%3, %c0_5, %c0_6] : memref<1x4x256xf32, #tpu.memory_space<vmem>>, vector<1x4x256xf32>
    %5 = vector.shape_cast %4 : vector<1x4x256xf32> to vector<4x256xf32>
    %cst = arith.constant dense<0.000000e+00> : vector<32x256xf32>
    %6 = tpu.matmul %0, %5, %cst {dimension_numbers = #tpu.dot_dimension_numbers<[1], [0], [0], [1], [0, 0, 1, 1], [], []>} : vector<32x4xf32>, vector<4x256xf32>, vector<32x256xf32> -> vector<32x256xf32>
    %7 = vector.broadcast %1 : vector<32x1xf32> to vector<32x256xf32>
    %8 = arith.addf %6, %7 : vector<32x256xf32>
    %9 = arith.index_cast %c0_i32 : i32 to index
    %c0_7 = arith.constant 0 : index
    %c0_8 = arith.constant 0 : index
    %10 = vector.load %arg6[%9, %c0_7, %c0_8] : memref<1x32x256xf32, #tpu.memory_space<vmem>>, vector<1x32x256xf32>
    %11 = vector.shape_cast %10 : vector<1x32x256xf32> to vector<32x256xf32>
    %12 = vector.broadcast %2 : vector<32x1xf32> to vector<32x256xf32>
    %13 = arith.mulf %12, %11 : vector<32x256xf32>
    %14 = arith.addf %8, %13 : vector<32x256xf32>
    %cst_9 = arith.constant 0.000000e+00 : f32
    %15 = vector.broadcast %cst_9 : f32 to vector<32x256xf32>
    %16 = arith.maximumf %14, %15 : vector<32x256xf32>
    %17 = arith.index_cast %c0_i32 : i32 to index
    %c0_10 = arith.constant 0 : index
    %c0_11 = arith.constant 0 : index
    %18 = vector.load %arg7[%17, %c0_10, %c0_11] : memref<1x32x256xf32, #tpu.memory_space<vmem>>, vector<1x32x256xf32>
    %19 = vector.shape_cast %18 : vector<1x32x256xf32> to vector<32x256xf32>
    %20 = vector.shape_cast %16 : vector<32x256xf32> to vector<1x32x256xf32>
    tpu.vector_store %arg7[%17, %c0_10, %c0_11], %20 {strides = array<i32>} : memref<1x32x256xf32, #tpu.memory_space<vmem>>, vector<1x32x256xf32>,
    %c1_i32 = arith.constant 1 : i32
    return
  }
  func.func @transform_0(%arg0: i32, %arg1: i32) -> (i32, i32, i32) {
    %c0_i32 = arith.constant 0 : i32
    %c0_i32_0 = arith.constant 0 : i32
    return %arg0, %c0_i32, %arg1 : i32, i32, i32
  }
  func.func @transform_1(%arg0: i32, %arg1: i32) -> (i32, i32) {
    %c0_i32 = arith.constant 0 : i32
    %c0_i32_0 = arith.constant 0 : i32
    %c0_i32_1 = arith.constant 0 : i32
    return %c0_i32, %c0_i32_0 : i32, i32
  }
  func.func @transform_2(%arg0: i32, %arg1: i32) -> (i32, i32) {
    %c0_i32 = arith.constant 0 : i32
    %c0_i32_0 = arith.constant 0 : i32
    %c0_i32_1 = arith.constant 0 : i32
    return %c0_i32, %c0_i32_0 : i32, i32
  }
  func.func @transform_3(%arg0: i32, %arg1: i32) -> (i32, i32) {
    %c0_i32 = arith.constant 0 : i32
    %c0_i32_0 = arith.constant 0 : i32
    %c0_i32_1 = arith.constant 0 : i32
    return %c0_i32, %c0_i32_0 : i32, i32
  }
  func.func @transform_4(%arg0: i32, %arg1: i32) -> (i32, i32, i32) {
    %c0_i32 = arith.constant 0 : i32
    %c0_i32_0 = arith.constant 0 : i32
    return %arg0, %c0_i32, %arg1 : i32, i32, i32
  }
  func.func @transform_5(%arg0: i32, %arg1: i32) -> (i32, i32, i32) {
    %c0_i32 = arith.constant 0 : i32
    %c0_i32_0 = arith.constant 0 : i32
    return %arg0, %c0_i32, %arg1 : i32, i32, i32
  }
}

</mosaic_0001>

<llo_original>
// kernel: tpu_custom_call.1
$region0: #{tpu_custom_call.1}
  #allocation0 [shape = 'u32[]', space=smem, size = 0x4, offset = 0x4, fixed_abs, tag = 'smem constant byte address 0x4 - core index']
  #allocation1 [shape = 'u32[72,128]{1,0:T(1,128)}', space=vmem, size = 0x9000, scoped, tag = 'internal scratch']
  %s0 = inlined_call_operand.vmem [shape: f32[2,4,256], index: 0, kind: input, shape index: {}]
  %s1 = inlined_call_operand.vmem [shape: f32[32,4], index: 1, kind: input, shape index: {}]
  %s2 = inlined_call_operand.vmem [shape: f32[32,1], index: 2, kind: input, shape index: {}]
  %s3 = inlined_call_operand.vmem [shape: f32[32,1], index: 3, kind: input, shape index: {}]
  %s4 = inlined_call_operand.hbm [shape: f32[2,32,256], index: 4, kind: input, shape index: {}]
  %s5 = inlined_call_operand.hbm [shape: f32[2,32,256], index: 5, kind: output, shape index: {}]
  %s6 = sld [smem:[#allocation0]]
  $region57: #{tpu_custom_call.1} parent=0
    _
  %s8 = ssub.s32 1, %s6
  %s9 = scalar_select 0, %s8, %s6
  $region1: #{tpu_custom_call.1} parent=0
    #allocation2 [shape = 'u8[65536]{0}', space=vmem, size = 0x10000, scoped, tag = 'input window, operand 4']
    #allocation3 [shape = 's32[2]{0}', space=sflag, size = 0x8, scoped, tag = 'scoped memory for tpu_custom_call.1']
    #allocation4 [shape = 's32[2]{0}', space=sflag, size = 0x8, scoped, tag = 'scoped memory for tpu_custom_call.1']
    #allocation5 [shape = 'u8[65536]{0}', space=vmem, size = 0x10000, scoped, tag = 'output window, operand 0']
    %10 = vsyncpa [#allocation3], 0
    %s11 = scalar_lea.sflag [#allocation3], 1
    %12 = vsyncpa %s11, 0
    %13 = vsyncpa [#allocation4], 0
    %s14 = scalar_lea.sflag [#allocation4], 1
    %15 = vsyncpa %s14, 0
    loop: start=0, step=1, limit=4
    $region2: #{tpu_custom_call.1} parent=1 // loop_pre_header
      _
    $region3: #{tpu_custom_call.1} parent=1 // loop_header
      %s17 = sphi 0, %s21
      %p18 = scmp.ge.s32.totalorder %s17, 4
      %s24 = sphi 0, %s36
      %s25 = sphi 0, %s32
      %s26 = sphi 0, %s24
      %s27 = sphi 0, %s25
      %s28 = sphi 0, %s26
      %s29 = sphi 0, %s27
      %s41 = sphi 0, %s43
      %s44 = sphi 0, %s41
      %s45 = sphi 0, %s44
      %s61 = sphi 0, %s45
      %s65 = sphi 0, %s65
      %s67 = sphi 0, %s65
      %s68 = sphi 0, %s67
      %s82 = sphi 0, %s68
      %s86 = sphi 0, %s86
      %s88 = sphi 0, %s86
      %s89 = sphi 0, %s88
      %s103 = sphi 0, %s89
      %s107 = sphi 0, %s107
      %s109 = sphi 0, %s107
      %s110 = sphi 0, %s109
      %s124 = sphi 0, %s110
      %s132 = sphi 0, %s134
      %s135 = sphi 0, %s132
      %s136 = sphi 0, %s135
      %s152 = sphi 0, %s136
      %s160 = sphi 0, %s162
      %s163 = sphi 0, %s160
      %s164 = sphi 0, %s163
      %s180 = sphi 0, %s164
    $region4: #{tpu_custom_call.1} parent=1 // loop_header_branch
      %20 = sbr.rel (%p18) target = $region8
    $region5: #{tpu_custom_call.1} parent=1 // loop_body
      %s22 = ssub.s32 %s17, 1
      %s23 = ssub.s32 %s17, 2
      %s30 = sadd.s32 1, %s25
      %p31 = scmp.ge.s32.totalorder %s30, 1
      %s32 = scalar_select %p31, 0, %s30
      %s33 = sadd.s32 1, %s24
      %s34 = scalar_select %p31, %s33, %s24
      %p35 = scmp.ge.s32.totalorder %s34, 2
      %s36 = scalar_select %p35, 0, %s34
      %s37 = ssub.s32 %s24, %s36
      %s38 = ssub.s32 %s25, %s32
      %s39 = sor.u32 %s37, %s38
      %p40 = scmp.eq.s32.totalorder %s39, 0
      %s42 = sadd.s32 %s41, 1
      %s43 = scalar_select %p40, %s41, %s42
      %p46 = pneg %p40
      %p47 = scmp.eq.s32.totalorder %s17, 1
      %p48 = por %p46, %p47
      %p49 = scmp.ne.s32.totalorder %s41, %s44
      %p50 = scmp.eq.s32.totalorder %s17, 0
      %p51 = por %p49, %p50
      %p52 = scmp.ne.s32.totalorder %s41, %s44
      %p53 = scmp.eq.s32.totalorder %s22, 1
      %p54 = por %p52, %p53
      %p55 = scmp.ne.s32.totalorder %s44, %s45
      %p56 = scmp.eq.s32.totalorder %s22, 0
      %p57 = por %p55, %p56
      %p58 = scmp.ne.s32.totalorder %s44, %s45
      %p59 = scmp.eq.s32.totalorder %s23, 1
      %p60 = por %p58, %p59
      %p62 = scmp.ne.s32.totalorder %s45, %s61
      %p63 = scmp.eq.s32.totalorder %s23, 0
      %p64 = por %p62, %p63
      %s66 = sadd.s32 %s65, 1
      %p69 = scmp.eq.s32.totalorder %s17, 1
      %p70 = scmp.ne.s32.totalorder %s65, %s67
      %p71 = scmp.eq.s32.totalorder %s17, 0
      %p72 = por %p70, %p71
      %p73 = scmp.ne.s32.totalorder %s65, %s67
      %p74 = scmp.eq.s32.totalorder %s22, 1
      %p75 = por %p73, %p74
      %p76 = scmp.ne.s32.totalorder %s67, %s68
      %p77 = scmp.eq.s32.totalorder %s22, 0
      %p78 = por %p76, %p77
      %p79 = scmp.ne.s32.totalorder %s67, %s68
      %p80 = scmp.eq.s32.totalorder %s23, 1
      %p81 = por %p79, %p80
      %p83 = scmp.ne.s32.totalorder %s68, %s82
      %p84 = scmp.eq.s32.totalorder %s23, 0
      %p85 = por %p83, %p84
      %s87 = sadd.s32 %s86, 1
      %p90 = scmp.eq.s32.totalorder %s17, 1
      %p91 = scmp.ne.s32.totalorder %s86, %s88
      %p92 = scmp.eq.s32.totalorder %s17, 0
      %p93 = por %p91, %p92
      %p94 = scmp.ne.s32.totalorder %s86, %s88
      %p95 = scmp.eq.s32.totalorder %s22, 1
      %p96 = por %p94, %p95
      %p97 = scmp.ne.s32.totalorder %s88, %s89
      %p98 = scmp.eq.s32.totalorder %s22, 0
      %p99 = por %p97, %p98
      %p100 = scmp.ne.s32.totalorder %s88, %s89
      %p101 = scmp.eq.s32.totalorder %s23, 1
      %p102 = por %p100, %p101
      %p104 = scmp.ne.s32.totalorder %s89, %s103
      %p105 = scmp.eq.s32.totalorder %s23, 0
      %p106 = por %p104, %p105
      %s108 = sadd.s32 %s107, 1
      %p111 = scmp.eq.s32.totalorder %s17, 1
      %p112 = scmp.ne.s32.totalorder %s107, %s109
      %p113 = scmp.eq.s32.totalorder %s17, 0
      %p114 = por %p112, %p113
      %p115 = scmp.ne.s32.totalorder %s107, %s109
      %p116 = scmp.eq.s32.totalorder %s22, 1
      %p117 = por %p115, %p116
      %p118 = scmp.ne.s32.totalorder %s109, %s110
      %p119 = scmp.eq.s32.totalorder %s22, 0
      %p120 = por %p118, %p119
      %p121 = scmp.ne.s32.totalorder %s109, %s110
      %p122 = scmp.eq.s32.totalorder %s23, 1
      %p123 = por %p121, %p122
      %p125 = scmp.ne.s32.totalorder %s110, %s124
      %p126 = scmp.eq.s32.totalorder %s23, 0
      %p127 = por %p125, %p126
      %s128 = ssub.s32 %s24, %s36
      %s129 = ssub.s32 %s25, %s32
      %s130 = sor.u32 %s128, %s129
      %p131 = scmp.eq.s32.totalorder %s130, 0
      %s133 = sadd.s32 %s132, 1
      %s134 = scalar_select %p131, %s132, %s133
      %p137 = pneg %p131
      %p138 = scmp.eq.s32.totalorder %s17, 1
      %p139 = por %p137, %p138
      %p140 = scmp.ne.s32.totalorder %s132, %s135
      %p141 = scmp.eq.s32.totalorder %s17, 0
      %p142 = por %p140, %p141
      %p143 = scmp.ne.s32.totalorder %s132, %s135
      %p144 = scmp.eq.s32.totalorder %s22, 1
      %p145 = por %p143, %p144
      %p146 = scmp.ne.s32.totalorder %s135, %s136
      %p147 = scmp.eq.s32.totalorder %s22, 0
      %p148 = por %p146, %p147
      %p149 = scmp.ne.s32.totalorder %s135, %s136
      %p150 = scmp.eq.s32.totalorder %s23, 1
      %p151 = por %p149, %p150
      %p153 = scmp.ne.s32.totalorder %s136, %s152
      %p154 = scmp.eq.s32.totalorder %s23, 0
      %p155 = por %p153, %p154
      %s156 = ssub.s32 %s24, %s36
      %s157 = ssub.s32 %s25, %s32
      %s158 = sor.u32 %s156, %s157
      %p159 = scmp.eq.s32.totalorder %s158, 0
      %s161 = sadd.s32 %s160, 1
      %s162 = scalar_select %p159, %s160, %s161
      %p165 = pneg %p159
      %p166 = scmp.eq.s32.totalorder %s17, 1
      %p167 = por %p165, %p166
      %p168 = scmp.ne.s32.totalorder %s160, %s163
      %p169 = scmp.eq.s32.totalorder %s17, 0
      %p170 = por %p168, %p169
      %p171 = scmp.ne.s32.totalorder %s160, %s163
      %p172 = scmp.eq.s32.totalorder %s22, 1
      %p173 = por %p171, %p172
      %p174 = scmp.ne.s32.totalorder %s163, %s164
      %p175 = scmp.eq.s32.totalorder %s22, 0
      %p176 = por %p174, %p175
      %p177 = scmp.ne.s32.totalorder %s163, %s164
      %p178 = scmp.eq.s32.totalorder %s23, 1
      %p179 = por %p177, %p178
      %p181 = scmp.ne.s32.totalorder %s164, %s180
      %p182 = scmp.eq.s32.totalorder %s23, 0
      %p183 = por %p181, %p182
      %p184 = scmp.le.s32.totalorder 1, %s17
      %p185 = scmp.lt.s32.totalorder %s17, 3
      %p186 = pnand %p184, %p185
      %p187 = pneg %p186
      // Predicated region
      $region9: #{tpu_custom_call.1} parent=5 // pred_check
        _
      $region10: #{tpu_custom_call.1} parent=5 // pred_check_branch
        %189 = sbr.rel (%p186) target = $region12
      $region11: #{tpu_custom_call.1} parent=5 // pred_region
        %s190 = ssub.s32 %s17, 1
        // Predicated region
        $region13: #{tpu_custom_call.1} parent=11 // pred_check
          %p191 = pneg %p78
        $region14: #{tpu_custom_call.1} parent=11 // pred_check_branch
          %193 = sbr.rel (%p191) target = $region16
        $region15: #{tpu_custom_call.1} parent=11 // pred_region
          _
        $region16: #{tpu_custom_call.1} parent=11 // pred_fallthru
          _
        // Predicated region
        $region17: #{tpu_custom_call.1} parent=11 // pred_check
          %p194 = pneg %p99
        $region18: #{tpu_custom_call.1} parent=11 // pred_check_branch
          %196 = sbr.rel (%p194) target = $region20
        $region19: #{tpu_custom_call.1} parent=11 // pred_region
          _
        $region20: #{tpu_custom_call.1} parent=11 // pred_fallthru
          _
        // Predicated region
        $region21: #{tpu_custom_call.1} parent=11 // pred_check
          %p197 = pneg %p120
        $region22: #{tpu_custom_call.1} parent=11 // pred_check_branch
          %199 = sbr.rel (%p197) target = $region24
        $region23: #{tpu_custom_call.1} parent=11 // pred_region
          _
        $region24: #{tpu_custom_call.1} parent=11 // pred_fallthru
          _
      $region12: #{tpu_custom_call.1} parent=5 // pred_fallthru
        _
      %p200 = scmp.lt.s32.totalorder %s17, 2
      // Predicated region
      $region25: #{tpu_custom_call.1} parent=5 // pred_check
        %p201 = pneg %p200
      $region26: #{tpu_custom_call.1} parent=5 // pred_check_branch
        %203 = sbr.rel (%p201) target = $region28
      $region27: #{tpu_custom_call.1} parent=5 // pred_region
        // Predicated region
        $region29: #{tpu_custom_call.1} parent=27 // pred_check
          %p204 = pneg %p51
        $region30: #{tpu_custom_call.1} parent=27 // pred_check_branch
          %206 = sbr.rel (%p204) target = $region32
        $region31: #{tpu_custom_call.1} parent=27 // pred_region
          %s207 = smul.u32 2, %s25
          %p208 = scmp.lt.s32.totalorder %s24, 1
          %s209 = scalar_select %p208, %s24, 1
          %p210 = scmp.lt.s32.totalorder %s207, 1
          %s211 = scalar_select %p210, %s207, 1
          %s212 = smul.addr %s209, 2
          %s213 = sadd.s32 %s211, %s212
          %s214 = smul.addr %s213, 4
          %s215 = scalar_lea.vmem %s0, %s214
          %s216 = smul.u32 2, %s25
        $region32: #{tpu_custom_call.1} parent=27 // pred_fallthru
          _
        // Predicated region
        $region33: #{tpu_custom_call.1} parent=27 // pred_check
          %p217 = pneg %p142
        $region34: #{tpu_custom_call.1} parent=27 // pred_check_branch
          %219 = sbr.rel (%p217) target = $region36
        $region35: #{tpu_custom_call.1} parent=27 // pred_region
          %s220 = sand.u32 %s132, 1
          %s221 = scalar_lea.sflag [#allocation3], %s220
          %s222 = sand.u32 %s132, 1
          %s223 = smul.addr %s222, 64
          %s224 = scalar_lea.vmem [#allocation2], %s223
          %s225 = smul.u32 2, %s25
          %227 = vsyncadd %s221, 0
          %s228 = smul.addr %s24, 8
          %s229 = sadd.s32 %s225, %s228
          %s230 = smul.addr %s229, 8
          %s231 = scalar_lea.hbm %s4, %s230
          %s232 = sshll.u32 %s231, 4
          %s233 = int_to_ptr.hbm [resolvable:$true] %s232
          %s234 = sshll.u32 %s224, 4
          %s235 = int_to_ptr.vmem [resolvable:$true] %s234
          %240 = dma.hbm_to_vmem [thread:$0]  %s233, 1024, %s235, %s221, 256, 256, 16
        $region36: #{tpu_custom_call.1} parent=27 // pred_fallthru
          _
      $region28: #{tpu_custom_call.1} parent=5 // pred_fallthru
        _
      %p241 = scmp.le.s32.totalorder 1, %s17
      %p242 = scmp.lt.s32.totalorder %s17, 3
      %p243 = pnand %p241, %p242
      %p244 = pneg %p243
      // Predicated region
      $region37: #{tpu_custom_call.1} parent=5 // pred_check
        _
      $region38: #{tpu_custom_call.1} parent=5 // pred_check_branch
        %246 = sbr.rel (%p243) target = $region40
      $region39: #{tpu_custom_call.1} parent=5 // pred_region
        %s247 = ssub.s32 %s17, 1
        %s248 = sand.u32 %s135, 1
        %s249 = scalar_lea.sflag [#allocation3], %s248
        %s250 = sand.u32 %s135, 1
        %s251 = smul.addr %s250, 64
        %s252 = scalar_lea.vmem [#allocation2], %s251
        // Predicated region
        $region41: #{tpu_custom_call.1} parent=39 // pred_check
          %p253 = pneg %p148
        $region42: #{tpu_custom_call.1} parent=39 // pred_check_branch
          %255 = sbr.rel (%p253) target = $region44
        $region43: #{tpu_custom_call.1} parent=39 // pred_region
          %257 = dma.done %s249, 1024
        $region44: #{tpu_custom_call.1} parent=39 // pred_fallthru
          _
        %s258 = smul.u32 2, %s27
        %p259 = scmp.lt.s32.totalorder %s26, 1
        %s260 = scalar_select %p259, %s26, 1
        %p261 = scmp.lt.s32.totalorder %s258, 1
        %s262 = scalar_select %p261, %s258, 1
        %s263 = smul.addr %s260, 2
        %s264 = sadd.s32 %s262, %s263
        %s265 = smul.addr %s264, 4
        %s266 = scalar_lea.vmem %s0, %s265
        %p267 = pneg %p57
        %p268 = pneg %p54
        %p269 = pneg %p78
        %p270 = pneg %p75
        %p271 = pneg %p99
        %p272 = pneg %p96
        %p273 = pneg %p120
        %p274 = pneg %p117
        %s275 = sand.u32 %s135, 1
        %s276 = scalar_lea.sflag [#allocation3], %s275
        %s277 = sand.u32 %s135, 1
        %s278 = smul.addr %s277, 64
        %s279 = scalar_lea.vmem [#allocation2], %s278
        %p280 = pneg %p148
        %p281 = pneg %p145
        %p282 = pneg %p176
        %p283 = pneg %p173
        %s284 = sand.u32 %s163, 1
        %s285 = scalar_lea.sflag [#allocation4], %s284
        %s286 = sand.u32 %s163, 1
        %s287 = smul.addr %s286, 64
        %s288 = scalar_lea.vmem [#allocation5], %s287
        %s289 = smul.u32 2, %s27
        %p290 = scmp.lt.s32.totalorder %s26, 1
        %s291 = scalar_select %p290, %s26, 1
        %p292 = scmp.lt.s32.totalorder %s289, 1
        %s293 = scalar_select %p292, %s289, 1
        %s294 = smul.addr %s291, 2
        %s295 = sadd.s32 %s293, %s294
        %s296 = smul.addr %s295, 4
        %s297 = scalar_lea.vmem %s0, %s296
        %s298 = smul.u32 2, %s27
        %s299 = smul.u32 2, %s27
        %s300 = smul.u32 2, %s27
        %v301 = vld [vmem:[%s1] sm:$0xff]
        %v302 = vld [vmem:[%s1 + $0x8] sm:$0xff]
        %v303 = vld [vmem:[%s1 + $0x10] sm:$0xff]
        %v304 = vld [vmem:[%s1 + $0x18] sm:$0xff]
        %v305 = vld [vmem:[%s2] sm:$0xff]
        %v306 = vld [vmem:[%s2 + $0x8] sm:$0xff]
        %v307 = vld [vmem:[%s2 + $0x10] sm:$0xff]
        %v308 = vld [vmem:[%s2 + $0x18] sm:$0xff]
        %v309 = vld [vmem:[%s3] sm:$0xff]
        %v310 = vld [vmem:[%s3 + $0x8] sm:$0xff]
        %v311 = vld [vmem:[%s3 + $0x10] sm:$0xff]
        %v312 = vld [vmem:[%s3 + $0x18] sm:$0xff]
        %v313 = vld [vmem:[%s297] sm:$0xff]
        %315 = vset.pattern.permute.xlu0 0
        %316 = vperm.xlu0 %315, %v305
        %v317 = vpop.permute.xlu0 %316
        %320 = vset.pattern.permute.xlu0 0
        %321 = vperm.xlu0 %320, %v306
        %v322 = vpop.permute.xlu0 %321
        %325 = vset.pattern.permute.xlu0 0
        %326 = vperm.xlu0 %325, %v307
        %v327 = vpop.permute.xlu0 %326
        %330 = vset.pattern.permute.xlu0 0
        %331 = vperm.xlu0 %330, %v308
        %v332 = vpop.permute.xlu0 %331
        %335 = vst [vmem:[#allocation1] ss:$2 sm:$0xff] %v313
        %v336 = vld.sshfl [vmem:[#allocation1] sm:$0xff pattern:$0x75316420]
        %v337 = vld.sshfl [vmem:[#allocation1 + $0x8] sm:$0xff pattern:$0x75316420]
        %vm338 = vcmask 31744
        %v340 = vsel %vm338, %v301, 0
        %v343 = vsel %vm338, %v302, 0
        %v346 = vsel %vm338, %v303, 0
        %v349 = vsel %vm338, %v304, 0
        %vm351 = vcmask 1043456
        %v352 = vsel %vm351, %v336, 0
        %v354 = vsel %vm351, %v337, 0
        %356 = vmatpush.msra.mxu0 0.0
        %357 = vmatpush.msra.mxu0 0.0
        %358 = vmatpush.msra.mxu0 0.0
        %359 = vmatpush.msra.mxu0 0.0
        %360 = vmatpush.msra.mxu0 0.0
        %361 = vmatpush.msra.mxu0 0.0
        %362 = vmatpush.msra.mxu0 0.0
        %363 = vmatpush.msra.mxu0 0.0
        %364 = vmatpush.msra.mxu0 0.0
        %365 = vmatpush.msra.mxu0 0.0
        %366 = vmatpush.msra.mxu0 0.0
        %367 = vmatpush.msra.mxu0 0.0
        %368 = vmatpush.msra.mxu0 0.0
        %369 = vmatpush.msra.mxu0 0.0
        %370 = vmatpush.msra.mxu0 0.0
        %371 = vmatpush.msra.mxu0 %v352
        %372 = vmatmul.f32.gmra.mxu0 %v340
        %v373 = vpop.f32.mrf.mxu0
        %v374 = vadd.f32 %v317, %v373
        %375 = vmatmul.f32.gmra.mxu0 %v343
        %v376 = vpop.f32.mrf.mxu0
        %v377 = vadd.f32 %v322, %v376
        %378 = vmatmul.f32.gmra.mxu0 %v346
        %v379 = vpop.f32.mrf.mxu0
        %v380 = vadd.f32 %v327, %v379
        %381 = vmatmul.f32.gmra.mxu0 %v349
        %v382 = vpop.f32.mrf.mxu0
        %v383 = vadd.f32 %v332, %v382
        %384 = vdwg.mxu0
        %385 = vmatpush.msra.mxu0 0.0
        %386 = vmatpush.msra.mxu0 0.0
        %387 = vmatpush.msra.mxu0 0.0
        %388 = vmatpush.msra.mxu0 0.0
        %389 = vmatpush.msra.mxu0 0.0
        %390 = vmatpush.msra.mxu0 0.0
        %391 = vmatpush.msra.mxu0 0.0
        %392 = vmatpush.msra.mxu0 0.0
        %393 = vmatpush.msra.mxu0 0.0
        %394 = vmatpush.msra.mxu0 0.0
        %395 = vmatpush.msra.mxu0 0.0
        %396 = vmatpush.msra.mxu0 0.0
        %397 = vmatpush.msra.mxu0 0.0
        %398 = vmatpush.msra.mxu0 0.0
        %399 = vmatpush.msra.mxu0 0.0
        %400 = vmatpush.msra.mxu0 %v354
        %401 = vmatmul.f32.gmra.mxu0 %v340
        %v402 = vpop.f32.mrf.mxu0
        %v403 = vadd.f32 %v317, %v402
        %404 = vmatmul.f32.gmra.mxu0 %v343
        %v405 = vpop.f32.mrf.mxu0
        %v406 = vadd.f32 %v322, %v405
        %407 = vmatmul.f32.gmra.mxu0 %v346
        %v408 = vpop.f32.mrf.mxu0
        %v409 = vadd.f32 %v327, %v408
        %410 = vmatmul.f32.gmra.mxu0 %v349
        %v411 = vpop.f32.mrf.mxu0
        %v412 = vadd.f32 %v332, %v411
        %413 = vdwg.mxu0
        %v414 = vld [vmem:[%s252] sm:$0xff]
        %v415 = vld [vmem:[%s252 + $0x8] sm:$0xff]
        %v416 = vld [vmem:[%s252 + $0x10] sm:$0xff]
        %v417 = vld [vmem:[%s252 + $0x18] sm:$0xff]
        %v418 = vld [vmem:[%s252 + $0x20] sm:$0xff]
        %v419 = vld [vmem:[%s252 + $0x28] sm:$0xff]
        %v420 = vld [vmem:[%s252 + $0x30] sm:$0xff]
        %v421 = vld [vmem:[%s252 + $0x38] sm:$0xff]
        %423 = vset.pattern.permute.xlu0 0
        %424 = vperm.xlu0 %423, %v309
        %v425 = vpop.permute.xlu0 %424
        %428 = vset.pattern.permute.xlu0 0
        %429 = vperm.xlu0 %428, %v310
        %v430 = vpop.permute.xlu0 %429
        %433 = vset.pattern.permute.xlu0 0
        %434 = vperm.xlu0 %433, %v311
        %v435 = vpop.permute.xlu0 %434
        %438 = vset.pattern.permute.xlu0 0
        %439 = vperm.xlu0 %438, %v312
        %v440 = vpop.permute.xlu0 %439
        %v442 = vmul.f32 %v425, %v414
        %v443 = vmul.f32 %v425, %v415
        %v444 = vmul.f32 %v430, %v416
        %v445 = vmul.f32 %v430, %v417
        %v446 = vmul.f32 %v435, %v418
        %v447 = vmul.f32 %v435, %v419
        %v448 = vmul.f32 %v440, %v420
        %v449 = vmul.f32 %v440, %v421
        %v450 = vadd.f32 %v374, %v442
        %v451 = vadd.f32 %v403, %v443
        %v452 = vadd.f32 %v377, %v444
        %v453 = vadd.f32 %v406, %v445
        %v454 = vadd.f32 %v380, %v446
        %v455 = vadd.f32 %v409, %v447
        %v456 = vadd.f32 %v383, %v448
        %v457 = vadd.f32 %v412, %v449
        %v458 = vmax.f32 %v450, 0.0
        %v459 = vmax.f32 %v451, 0.0
        %v460 = vmax.f32 %v452, 0.0
        %v461 = vmax.f32 %v453, 0.0
        %v462 = vmax.f32 %v454, 0.0
        %v463 = vmax.f32 %v455, 0.0
        %v464 = vmax.f32 %v456, 0.0
        %v465 = vmax.f32 %v457, 0.0
        %466 = vst [vmem:[%s288] sm:$0xff] %v458
        %467 = vst [vmem:[%s288 + $0x8] sm:$0xff] %v459
        %468 = vst [vmem:[%s288 + $0x10] sm:$0xff] %v460
        %469 = vst [vmem:[%s288 + $0x18] sm:$0xff] %v461
        %470 = vst [vmem:[%s288 + $0x20] sm:$0xff] %v462
        %471 = vst [vmem:[%s288 + $0x28] sm:$0xff] %v463
        %472 = vst [vmem:[%s288 + $0x30] sm:$0xff] %v464
        %473 = vst [vmem:[%s288 + $0x38] sm:$0xff] %v465
        %s474 = sand.u32 %s163, 1
        %s475 = scalar_lea.sflag [#allocation4], %s474
        %s476 = sand.u32 %s163, 1
        %s477 = smul.addr %s476, 64
        %s478 = scalar_lea.vmem [#allocation5], %s477
        // Predicated region
        $region45: #{tpu_custom_call.1} parent=39 // pred_check
          %p479 = pneg %p173
        $region46: #{tpu_custom_call.1} parent=39 // pred_check_branch
          %481 = sbr.rel (%p479) target = $region48
        $region47: #{tpu_custom_call.1} parent=39 // pred_region
          %s482 = smul.u32 2, %s27
          %484 = vsyncadd %s475, 0
          %s485 = smul.addr %s26, 8
          %s486 = sadd.s32 %s482, %s485
          %s487 = smul.addr %s486, 8
          %s488 = scalar_lea.hbm %s5, %s487
          %s489 = sshll.u32 %s478, 4
          %s490 = int_to_ptr.vmem [resolvable:$true] %s489
          %s491 = sshll.u32 %s488, 4
          %s492 = int_to_ptr.hbm [resolvable:$true] %s491
          %497 = dma.vmem_to_hbm [thread:$0]  %s490, 1024, %s492, %s475, 256, 256, 16
        $region48: #{tpu_custom_call.1} parent=39 // pred_fallthru
          _
      $region40: #{tpu_custom_call.1} parent=5 // pred_fallthru
        _
      %p498 = scmp.le.s32.totalorder 2, %s17
      // Predicated region
      $region49: #{tpu_custom_call.1} parent=5 // pred_check
        %p499 = pneg %p498
      $region50: #{tpu_custom_call.1} parent=5 // pred_check_branch
        %501 = sbr.rel (%p499) target = $region52
      $region51: #{tpu_custom_call.1} parent=5 // pred_region
        %s502 = ssub.s32 %s17, 2
        // Predicated region
        $region53: #{tpu_custom_call.1} parent=51 // pred_check
          %p503 = pneg %p179
        $region54: #{tpu_custom_call.1} parent=51 // pred_check_branch
          %505 = sbr.rel (%p503) target = $region56
        $region55: #{tpu_custom_call.1} parent=51 // pred_region
          %s506 = sand.u32 %s164, 1
          %s507 = scalar_lea.sflag [#allocation4], %s506
          %s508 = sand.u32 %s164, 1
          %s509 = smul.addr %s508, 64
          %s510 = scalar_lea.vmem [#allocation5], %s509
          %512 = dma.done %s507, 1024
        $region56: #{tpu_custom_call.1} parent=51 // pred_fallthru
          _
      $region52: #{tpu_custom_call.1} parent=5 // pred_fallthru
        _
    $region6: #{tpu_custom_call.1} parent=1 // loop_footer
      %s21 = sadd.s32 1, %s17
    $region7: #{tpu_custom_call.1} parent=1 // loop_footer_branch
      %16 = sbr.rel target = $region3
    $region8: #{tpu_custom_call.1} parent=1 // loop_exit
      _
    %513 = vsyncpa [#allocation3], 1
    %s514 = scalar_lea.sflag [#allocation3], 1
    %515 = vsyncpa %s514, 1
    %516 = vsyncpa [#allocation4], 1
    %s517 = scalar_lea.sflag [#allocation4], 1
    %518 = vsyncpa %s517, 1

</llo_original>
